<compile_context>
chip_gen: v7x
topology: tpu7x:2x2x1
jax: 0.10.0
libtpu: 0.0.40
codegen_flags: <defaults>
</compile_context>

<pallas_src>
import functools

import jax
import jax.numpy as jnp
from jax import lax
from jax.experimental import pallas as pl
from jax.experimental.pallas import tpu as pltpu

EMB_DIM = 8
NUM_FEATURES = 6
HIDDEN = 64
IN_DIM = NUM_FEATURES + 3 * EMB_DIM  # 30
_LANE = 128


def _round_up(x, m):
    return ((x + m - 1) // m) * m


def _flow_mlp_kernel(feat_t_ref, cid_ref, sid_ref, curid_ref,
                     cproj_t_ref, sproj_t_ref, curproj_t_ref,
                     w1f_t_ref, b1_ref, w2_ref, b2_ref, o_ref):
    f32 = jnp.float32
    bf16 = jnp.bfloat16

    # Embedding gather fused with its fc1 slice: exact one-hot matmul on the
    # otherwise-idle MXU.  proj_t is (HIDDEN, N_pad) = (table @ W1_slice).T,
    # the one-hot is (N_pad, T), so the product is the fc1 contribution
    # (HIDDEN, T) of that embedding group, accumulated in f32.
    def emb_fc1_t(proj_t_ref, ids_ref):
        n = proj_t_ref.shape[1]
        t = ids_ref.shape[-1]
        row_ids = lax.broadcasted_iota(jnp.int32, (n, t), 0)
        onehot = (row_ids == ids_ref[...]).astype(bf16)       # exact 0/1
        return jnp.dot(proj_t_ref[...], onehot, preferred_element_type=f32)

    # fc1, transposed layout (batch on lanes).
    h = jnp.dot(w1f_t_ref[...], feat_t_ref[...], preferred_element_type=f32)
    h += emb_fc1_t(cproj_t_ref, cid_ref)
    h += emb_fc1_t(sproj_t_ref, sid_ref)
    h += emb_fc1_t(curproj_t_ref, curid_ref)
    h = jnp.maximum(h + b1_ref[...], 0.0)                     # (HIDDEN, T) f32

    # fc2 as a sublane reduction -> lane-dense (1, T) output row.
    o_ref[...] = (jnp.sum(h * w2_ref[...], axis=0, keepdims=True)
                  + b2_ref[0])


def flow_predictor_forward(params, features, client_id, segment_id,
                           currency_pair_id, *, max_tile_b=1024):
    """JAX wrapper reproducing FlowPredictor.forward."""
    B = features.shape[0]
    tile_b = min(max_tile_b, _round_up(max(B, 1), _LANE))
    Bp = _round_up(B, tile_b)
    n_tiles = Bp // tile_b
    pad = Bp - B

    f32, bf16 = jnp.float32, jnp.bfloat16

    # Activations: batch on the lane axis, bf16 features, int32 ids.
    feat_t = jnp.pad(features.astype(bf16).T, ((0, 0), (0, pad)))    # (6, Bp)
    cid = jnp.pad(client_id.astype(jnp.int32), (0, pad)).reshape(1, Bp)
    sid = jnp.pad(segment_id.astype(jnp.int32), (0, pad)).reshape(1, Bp)
    curid = jnp.pad(currency_pair_id.astype(jnp.int32),
                    (0, pad)).reshape(1, Bp)

    # Parameters (tiny; stay VMEM-resident across the whole grid).
    # Fold the fc1 row-slices for the three embedding groups into the tables
    # (done in f32 here, i.e. at trace time under jit with closed-over params).
    w1 = params["w1"].astype(f32)                             # (30, 64)
    w1f_t = w1[:NUM_FEATURES].T.astype(bf16)                  # (64, 6)
    w1c = w1[NUM_FEATURES:NUM_FEATURES + EMB_DIM]             # (8, 64)
    w1s = w1[NUM_FEATURES + EMB_DIM:NUM_FEATURES + 2 * EMB_DIM]
    w1cur = w1[NUM_FEATURES + 2 * EMB_DIM:]

    def fold_table(tab, w_slice):
        proj = tab.astype(f32) @ w_slice                      # (N, 64) f32
        n = proj.shape[0]
        n_pad = _round_up(max(n, 1), 8)                       # clean sublanes
        proj = jnp.pad(proj, ((0, n_pad - n), (0, 0)))
        return proj.T.astype(bf16)                            # (64, N_pad)

    cproj_t = fold_table(params["client_emb"], w1c)
    sproj_t = fold_table(params["segment_emb"], w1s)
    curproj_t = fold_table(params["currency_emb"], w1cur)

    b1_col = params["b1"].reshape(HIDDEN, 1).astype(f32)      # (64, 1)
    w2_col = params["w2"].reshape(HIDDEN, 1).astype(f32)      # (64, 1)
    b2 = params["b2"].reshape(1).astype(f32)                  # (1,) SMEM scalar

    def act_spec(rows):
        return pl.BlockSpec((rows, tile_b), lambda i: (0, i))

    def resident(arr):
        return pl.BlockSpec(arr.shape, lambda i: (0, 0))

    nc, ns, ncur = cproj_t.shape[1], sproj_t.shape[1], curproj_t.shape[1]
    flops = int(2 * Bp * HIDDEN * (NUM_FEATURES + nc + ns + ncur)
                + 3 * Bp * HIDDEN)
    bytes_accessed = int(feat_t.size * 2 + 3 * Bp * 4 + Bp * 4
                         + (cproj_t.size + sproj_t.size + curproj_t.size) * 2
                         + w1f_t.size * 2 + (2 * HIDDEN + 1) * 4)

    out_t = pl.pallas_call(
        _flow_mlp_kernel,
        out_shape=jax.ShapeDtypeStruct((1, Bp), f32),
        grid=(n_tiles,),
        in_specs=[
            act_spec(NUM_FEATURES),                 # features (6, tile_b)
            act_spec(1), act_spec(1), act_spec(1),  # id vectors (1, tile_b)
            resident(cproj_t), resident(sproj_t), resident(curproj_t),
            resident(w1f_t),
            resident(b1_col), resident(w2_col),
            pl.BlockSpec(memory_space=pltpu.SMEM),  # b2 scalar
        ],
        out_specs=pl.BlockSpec((1, tile_b), lambda i: (0, i)),
        compiler_params=pltpu.CompilerParams(
            dimension_semantics=("parallel",)),
        cost_estimate=pl.CostEstimate(
            flops=flops, transcendentals=0, bytes_accessed=bytes_accessed),
    )(feat_t, cid, sid, curid,
      cproj_t, sproj_t, curproj_t,
      w1f_t, b1_col, w2_col, b2)

    out = out_t[0, :B]
    # torch .squeeze() drops ALL size-1 dims: for B == 1 it returns a scalar.
    return out.reshape(()) if B == 1 else out


def init_params(key, num_clients, num_segments, num_currency_pairs,
                emb_dim=EMB_DIM):
    """Deterministic synthetic parameter init (shapes match nn.Module)."""
    ks = jax.random.split(key, 7)
    return {
        "client_emb": jax.random.normal(ks[0], (num_clients, emb_dim),
                                        jnp.float32),
        "segment_emb": jax.random.normal(ks[1], (num_segments, emb_dim),
                                         jnp.float32),
        "currency_emb": jax.random.normal(ks[2], (num_currency_pairs, emb_dim),
                                          jnp.float32),
        # fc1: Linear(30, 64) stored as (in, out) for x @ W
        "w1": jax.random.normal(ks[3], (IN_DIM, HIDDEN), jnp.float32) * 0.1,
        "b1": jax.random.normal(ks[4], (1, HIDDEN), jnp.float32) * 0.01,
        # fc2: Linear(64, 1)
        "w2": jax.random.normal(ks[5], (HIDDEN, 1), jnp.float32) * 0.1,
        "b2": jax.random.normal(ks[6], (1, 1), jnp.float32) * 0.01,
    }


def _reference_forward(params, features, client_id, segment_id,
                       currency_pair_id):
    """Pure-JAX f32 reference for correctness checking."""
    c_emb = params["client_emb"][client_id]
    s_emb = params["segment_emb"][segment_id]
    cur_emb = params["currency_emb"][currency_pair_id]
    x = jnp.concatenate([features, c_emb, s_emb, cur_emb], axis=1)
    h = jnp.maximum(x @ params["w1"] + params["b1"], 0.0)
    return jnp.squeeze(h @ params["w2"] + params["b2"], axis=-1)


if __name__ == "__main__":
    key = jax.random.PRNGKey(0)
    k_param, k_feat, k_cid, k_sid, k_cur = jax.random.split(key, 5)

    batch = 32                                     # matches the module's demo
    num_clients, num_segments, num_currency_pairs = 500, 10, 20

    params = init_params(k_param, num_clients, num_segments,
                         num_currency_pairs)

    features = jax.random.normal(k_feat, (batch, NUM_FEATURES), jnp.float32)
    client_id = jax.random.randint(k_cid, (batch,), 0, num_clients)
    segment_id = jax.random.randint(k_sid, (batch,), 0, num_segments)
    currency_pair_id = jax.random.randint(k_cur, (batch,), 0,
                                          num_currency_pairs)

    fwd = jax.jit(functools.partial(flow_predictor_forward, params))
    out = fwd(features, client_id, segment_id, currency_pair_id)
    out = jax.block_until_ready(out)

    ref = _reference_forward(params, features, client_id, segment_id,
                             currency_pair_id)
    assert out.shape == (batch,), out.shape
    # bf16 matmul inputs vs f32 reference -> loose-but-tight-enough tolerance.
    assert jnp.allclose(out, ref, atol=2e-2, rtol=2e-2), \
        float(jnp.max(jnp.abs(out - ref)))

    print("KERNEL_OK")
</pallas_src>

<mosaic_0001>
module attributes {stable_mosaic.version = 11 : i64} {
  func.func @_flow_mlp_kernel(%arg0: i32, %arg1: memref<6x128xbf16, #tpu.memory_space<vmem>>, %arg2: memref<1x128xi32, #tpu.memory_space<vmem>>, %arg3: memref<1x128xi32, #tpu.memory_space<vmem>>, %arg4: memref<1x128xi32, #tpu.memory_space<vmem>>, %arg5: memref<64x504xbf16, #tpu.memory_space<vmem>>, %arg6: memref<64x16xbf16, #tpu.memory_space<vmem>>, %arg7: memref<64x24xbf16, #tpu.memory_space<vmem>>, %arg8: memref<64x6xbf16, #tpu.memory_space<vmem>>, %arg9: memref<64x1xf32, #tpu.memory_space<vmem>>, %arg10: memref<64x1xf32, #tpu.memory_space<vmem>>, %arg11: memref<1xf32, #tpu.memory_space<smem>>, %arg12: memref<1x128xf32, #tpu.memory_space<vmem>>) attributes {dimension_semantics = [#tpu.dimension_semantics<parallel>], iteration_bounds = array<i64: 1>, scalar_prefetch = 0 : i64, scratch_operands = 0 : i64, tpu.core_type = #tpu.core_type<tc>, window_params = [{transform_indices = @transform_0, window_bounds = array<i64: 6, 128>}, {transform_indices = @transform_1, window_bounds = array<i64: 1, 128>}, {transform_indices = @transform_2, window_bounds = array<i64: 1, 128>}, {transform_indices = @transform_3, window_bounds = array<i64: 1, 128>}, {pipeline_mode = #tpu.pipeline_mode<synchronous>, transform_indices = @transform_4, window_bounds = array<i64: 64, 504>}, {pipeline_mode = #tpu.pipeline_mode<synchronous>, transform_indices = @transform_5, window_bounds = array<i64: 64, 16>}, {pipeline_mode = #tpu.pipeline_mode<synchronous>, transform_indices = @transform_6, window_bounds = array<i64: 64, 24>}, {pipeline_mode = #tpu.pipeline_mode<synchronous>, transform_indices = @transform_7, window_bounds = array<i64: 64, 6>}, {pipeline_mode = #tpu.pipeline_mode<synchronous>, transform_indices = @transform_8, window_bounds = array<i64: 64, 1>}, {pipeline_mode = #tpu.pipeline_mode<synchronous>, transform_indices = @transform_9, window_bounds = array<i64: 64, 1>}, {transform_indices = @transform_10, window_bounds = array<i64: 1>}, {transform_indices = @transform_11, window_bounds = array<i64: 1, 128>}]} {
    %c0 = arith.constant 0 : index
    %c0_0 = arith.constant 0 : index
    %0 = vector.load %arg8[%c0, %c0_0] : memref<64x6xbf16, #tpu.memory_space<vmem>>, vector<64x6xbf16>
    %c0_1 = arith.constant 0 : index
    %c0_2 = arith.constant 0 : index
    %1 = vector.load %arg1[%c0_1, %c0_2] : memref<6x128xbf16, #tpu.memory_space<vmem>>, vector<6x128xbf16>
    %cst = arith.constant dense<0.000000e+00> : vector<64x128xf32>
    %2 = tpu.matmul %0, %1, %cst {dimension_numbers = #tpu.dot_dimension_numbers<[1], [0], [0], [1], [0, 0, 1, 1], [], []>} : vector<64x6xbf16>, vector<6x128xbf16>, vector<64x128xf32> -> vector<64x128xf32>
    %3 = tpu.iota {dimensions = array<i32: 0>} : vector<504x128xi32>
    %c0_3 = arith.constant 0 : index
    %c0_4 = arith.constant 0 : index
    %4 = vector.load %arg2[%c0_3, %c0_4] : memref<1x128xi32, #tpu.memory_space<vmem>>, vector<1x128xi32>
    %5 = vector.broadcast %4 : vector<1x128xi32> to vector<504x128xi32>
    %6 = arith.cmpi eq, %3, %5 : vector<504x128xi32>
    %7 = arith.extui %6 : vector<504x128xi1> to vector<504x128xi32>
    %8 = arith.sitofp %7 : vector<504x128xi32> to vector<504x128xf32>
    %9 = arith.truncf %8 : vector<504x128xf32> to vector<504x128xbf16>
    %c0_5 = arith.constant 0 : index
    %c0_6 = arith.constant 0 : index
    %10 = vector.load %arg5[%c0_5, %c0_6] : memref<64x504xbf16, #tpu.memory_space<vmem>>, vector<64x504xbf16>
    %cst_7 = arith.constant dense<0.000000e+00> : vector<64x128xf32>
    %11 = tpu.matmul %10, %9, %cst_7 {dimension_numbers = #tpu.dot_dimension_numbers<[1], [0], [0], [1], [0, 0, 1, 1], [], []>} : vector<64x504xbf16>, vector<504x128xbf16>, vector<64x128xf32> -> vector<64x128xf32>
    %12 = arith.addf %2, %11 : vector<64x128xf32>
    %13 = tpu.iota {dimensions = array<i32: 0>} : vector<16x128xi32>
    %c0_8 = arith.constant 0 : index
    %c0_9 = arith.constant 0 : index
    %14 = vector.load %arg3[%c0_8, %c0_9] : memref<1x128xi32, #tpu.memory_space<vmem>>, vector<1x128xi32>
    %15 = vector.broadcast %14 : vector<1x128xi32> to vector<16x128xi32>
    %16 = arith.cmpi eq, %13, %15 : vector<16x128xi32>
    %17 = arith.extui %16 : vector<16x128xi1> to vector<16x128xi32>
    %18 = arith.sitofp %17 : vector<16x128xi32> to vector<16x128xf32>
    %19 = arith.truncf %18 : vector<16x128xf32> to vector<16x128xbf16>
    %c0_10 = arith.constant 0 : index
    %c0_11 = arith.constant 0 : index
    %20 = vector.load %arg6[%c0_10, %c0_11] : memref<64x16xbf16, #tpu.memory_space<vmem>>, vector<64x16xbf16>
    %cst_12 = arith.constant dense<0.000000e+00> : vector<64x128xf32>
    %21 = tpu.matmul %20, %19, %cst_12 {dimension_numbers = #tpu.dot_dimension_numbers<[1], [0], [0], [1], [0, 0, 1, 1], [], []>} : vector<64x16xbf16>, vector<16x128xbf16>, vector<64x128xf32> -> vector<64x128xf32>
    %22 = arith.addf %12, %21 : vector<64x128xf32>
    %23 = tpu.iota {dimensions = array<i32: 0>} : vector<24x128xi32>
    %c0_13 = arith.constant 0 : index
    %c0_14 = arith.constant 0 : index
    %24 = vector.load %arg4[%c0_13, %c0_14] : memref<1x128xi32, #tpu.memory_space<vmem>>, vector<1x128xi32>
    %25 = vector.broadcast %24 : vector<1x128xi32> to vector<24x128xi32>
    %26 = arith.cmpi eq, %23, %25 : vector<24x128xi32>
    %27 = arith.extui %26 : vector<24x128xi1> to vector<24x128xi32>
    %28 = arith.sitofp %27 : vector<24x128xi32> to vector<24x128xf32>
    %29 = arith.truncf %28 : vector<24x128xf32> to vector<24x128xbf16>
    %c0_15 = arith.constant 0 : index
    %c0_16 = arith.constant 0 : index
    %30 = vector.load %arg7[%c0_15, %c0_16] : memref<64x24xbf16, #tpu.memory_space<vmem>>, vector<64x24xbf16>
    %cst_17 = arith.constant dense<0.000000e+00> : vector<64x128xf32>
    %31 = tpu.matmul %30, %29, %cst_17 {dimension_numbers = #tpu.dot_dimension_numbers<[1], [0], [0], [1], [0, 0, 1, 1], [], []>} : vector<64x24xbf16>, vector<24x128xbf16>, vector<64x128xf32> -> vector<64x128xf32>
    %32 = arith.addf %22, %31 : vector<64x128xf32>
    %c0_18 = arith.constant 0 : index
    %c0_19 = arith.constant 0 : index
    %33 = vector.load %arg9[%c0_18, %c0_19] : memref<64x1xf32, #tpu.memory_space<vmem>>, vector<64x1xf32>
    %34 = vector.broadcast %33 : vector<64x1xf32> to vector<64x128xf32>
    %35 = arith.addf %32, %34 : vector<64x128xf32>
    %cst_20 = arith.constant 0.000000e+00 : f32
    %36 = vector.broadcast %cst_20 : f32 to vector<64x128xf32>
    %37 = arith.maximumf %35, %36 : vector<64x128xf32>
    %c0_21 = arith.constant 0 : index
    %c0_22 = arith.constant 0 : index
    %38 = vector.load %arg10[%c0_21, %c0_22] : memref<64x1xf32, #tpu.memory_space<vmem>>, vector<64x1xf32>
    %39 = vector.broadcast %38 : vector<64x1xf32> to vector<64x128xf32>
    %40 = arith.mulf %37, %39 : vector<64x128xf32>
    %cst_23 = arith.constant dense<0.000000e+00> : vector<128xf32>
    %41 = vector.multi_reduction <add>, %40, %cst_23 [0] : vector<64x128xf32> to vector<128xf32>
    %42 = vector.shape_cast %41 : vector<128xf32> to vector<1x128xf32>
    %c0_24 = arith.constant 0 : index
    %43 = memref.load %arg11[%c0_24] : memref<1xf32, #tpu.memory_space<smem>>
    %44 = vector.broadcast %43 : f32 to vector<1x128xf32>
    %45 = arith.addf %42, %44 : vector<1x128xf32>
    %c0_25 = arith.constant 0 : index
    %c0_26 = arith.constant 0 : index
    %46 = vector.load %arg12[%c0_25, %c0_26] : memref<1x128xf32, #tpu.memory_space<vmem>>, vector<1x128xf32>
    tpu.vector_store %arg12[%c0_25, %c0_26], %45 {strides = array<i32>} : memref<1x128xf32, #tpu.memory_space<vmem>>, vector<1x128xf32>,
    return
  }
  func.func @transform_0(%arg0: i32) -> (i32, i32) {
    %c0_i32 = arith.constant 0 : i32
    %c0_i32_0 = arith.constant 0 : i32
    return %c0_i32, %arg0 : i32, i32
  }
  func.func @transform_1(%arg0: i32) -> (i32, i32) {
    %c0_i32 = arith.constant 0 : i32
    %c0_i32_0 = arith.constant 0 : i32
    return %c0_i32, %arg0 : i32, i32
  }
  func.func @transform_2(%arg0: i32) -> (i32, i32) {
    %c0_i32 = arith.constant 0 : i32
    %c0_i32_0 = arith.constant 0 : i32
    return %c0_i32, %arg0 : i32, i32
  }
  func.func @transform_3(%arg0: i32) -> (i32, i32) {
    %c0_i32 = arith.constant 0 : i32
    %c0_i32_0 = arith.constant 0 : i32
    return %c0_i32, %arg0 : i32, i32
  }
  func.func @transform_4(%arg0: i32) -> (i32, i32) {
    %c0_i32 = arith.constant 0 : i32
    %c0_i32_0 = arith.constant 0 : i32
    %c0_i32_1 = arith.constant 0 : i32
    return %c0_i32, %c0_i32_0 : i32, i32
  }
  func.func @transform_5(%arg0: i32) -> (i32, i32) {
    %c0_i32 = arith.constant 0 : i32
    %c0_i32_0 = arith.constant 0 : i32
    %c0_i32_1 = arith.constant 0 : i32
    return %c0_i32, %c0_i32_0 : i32, i32
  }
  func.func @transform_6(%arg0: i32) -> (i32, i32) {
    %c0_i32 = arith.constant 0 : i32
    %c0_i32_0 = arith.constant 0 : i32
    %c0_i32_1 = arith.constant 0 : i32
    return %c0_i32, %c0_i32_0 : i32, i32
  }
  func.func @transform_7(%arg0: i32) -> (i32, i32) {
    %c0_i32 = arith.constant 0 : i32
    %c0_i32_0 = arith.constant 0 : i32
    %c0_i32_1 = arith.constant 0 : i32
    return %c0_i32, %c0_i32_0 : i32, i32
  }
  func.func @transform_8(%arg0: i32) -> (i32, i32) {
    %c0_i32 = arith.constant 0 : i32
    %c0_i32_0 = arith.constant 0 : i32
    %c0_i32_1 = arith.constant 0 : i32
    return %c0_i32, %c0_i32_0 : i32, i32
  }
  func.func @transform_9(%arg0: i32) -> (i32, i32) {
    %c0_i32 = arith.constant 0 : i32
    %c0_i32_0 = arith.constant 0 : i32
    %c0_i32_1 = arith.constant 0 : i32
    return %c0_i32, %c0_i32_0 : i32, i32
  }
  func.func @transform_10(%arg0: i32) -> i32 {
    %c0_i32 = arith.constant 0 : i32
    %c0_i32_0 = arith.constant 0 : i32
    return %c0_i32 : i32
  }
  func.func @transform_11(%arg0: i32) -> (i32, i32) {
    %c0_i32 = arith.constant 0 : i32
    %c0_i32_0 = arith.constant 0 : i32
    return %c0_i32, %arg0 : i32, i32
  }
}

</mosaic_0001>

<llo_original>
// kernel: flow_predictor_forward.1
$region0: #{flow_predictor_forward.1}
  #allocation0 [shape = 'u32[]', space=smem, size = 0x4, offset = 0x4, fixed_abs, tag = 'smem constant byte address 0x4 - core index']
  #allocation1 [shape = 'u32[144,128]{1,0:T(1,128)}', space=vmem, size = 0x12000, scoped, tag = 'internal scratch']
  #allocation2 [shape = 'f32[1]{0:T(128)S(6)}', space=smem, size = 0x200, scoped, tag = 'scoped memory for flow_predictor_forward.1']
  %s0 = inlined_call_operand.vmem [shape: bf16[6,128], index: 0, kind: input, shape index: {}]
  %s1 = inlined_call_operand.vmem [shape: s32[1,128], index: 1, kind: input, shape index: {}]
  %s2 = inlined_call_operand.vmem [shape: s32[1,128], index: 2, kind: input, shape index: {}]
  %s3 = inlined_call_operand.vmem [shape: s32[1,128], index: 3, kind: input, shape index: {}]
  %s4 = inlined_call_operand.vmem [shape: bf16[64,504], index: 4, kind: input, shape index: {}]
  %s5 = inlined_call_operand.vmem [shape: bf16[64,16], index: 5, kind: input, shape index: {}]
  %s6 = inlined_call_operand.vmem [shape: bf16[64,24], index: 6, kind: input, shape index: {}]
  %s7 = inlined_call_operand.vmem [shape: bf16[64,6], index: 7, kind: input, shape index: {}]
  %s8 = inlined_call_operand.vmem [shape: f32[64,1], index: 8, kind: input, shape index: {}]
  %s9 = inlined_call_operand.vmem [shape: f32[64,1], index: 9, kind: input, shape index: {}]
  %s10 = inlined_call_operand.<no memory space> [shape: f32[1], index: 10, kind: input, shape index: {}]
  %s11 = inlined_call_operand.vmem [shape: f32[1,128], index: 11, kind: output, shape index: {}]
  %s12 = sld [smem:[#allocation0]]
  $region54: #{flow_predictor_forward.1} parent=0
    _
  %s14 = ssub.s32 1, %s12
  %s15 = scalar_select 0, %s14, %s12
  %16 = sst [smem:[#allocation2]] %s10
  // Predicated region
  $region2: #{flow_predictor_forward.1} parent=0 // pred_check
    _
  $region3: #{flow_predictor_forward.1} parent=0 // pred_check_branch
    %18 = sbr.rel (0) target = $region5
  $region4: #{flow_predictor_forward.1} parent=0 // pred_region
    _
  $region5: #{flow_predictor_forward.1} parent=0 // pred_fallthru
    _
  // Predicated region
  $region6: #{flow_predictor_forward.1} parent=0 // pred_check
    _
  $region7: #{flow_predictor_forward.1} parent=0 // pred_check_branch
    %20 = sbr.rel (0) target = $region9
  $region8: #{flow_predictor_forward.1} parent=0 // pred_region
    _
  $region9: #{flow_predictor_forward.1} parent=0 // pred_fallthru
    _
  // Predicated region
  $region10: #{flow_predictor_forward.1} parent=0 // pred_check
    _
  $region11: #{flow_predictor_forward.1} parent=0 // pred_check_branch
    %22 = sbr.rel (0) target = $region13
  $region12: #{flow_predictor_forward.1} parent=0 // pred_region
    _
  $region13: #{flow_predictor_forward.1} parent=0 // pred_fallthru
    _
  // Predicated region
  $region14: #{flow_predictor_forward.1} parent=0 // pred_check
    _
  $region15: #{flow_predictor_forward.1} parent=0 // pred_check_branch
    %24 = sbr.rel (0) target = $region17
  $region16: #{flow_predictor_forward.1} parent=0 // pred_region
    _
  $region17: #{flow_predictor_forward.1} parent=0 // pred_fallthru
    _
  // Predicated region
  $region18: #{flow_predictor_forward.1} parent=0 // pred_check
    _
  $region19: #{flow_predictor_forward.1} parent=0 // pred_check_branch
    %26 = sbr.rel (0) target = $region21
  $region20: #{flow_predictor_forward.1} parent=0 // pred_region
    _
  $region21: #{flow_predictor_forward.1} parent=0 // pred_fallthru
    _
  // Predicated region
  $region22: #{flow_predictor_forward.1} parent=0 // pred_check
    _
  $region23: #{flow_predictor_forward.1} parent=0 // pred_check_branch
    %28 = sbr.rel (0) target = $region25
  $region24: #{flow_predictor_forward.1} parent=0 // pred_region
    _
  $region25: #{flow_predictor_forward.1} parent=0 // pred_fallthru
    _
  // Predicated region
  $region26: #{flow_predictor_forward.1} parent=0 // pred_check
    _
  $region27: #{flow_predictor_forward.1} parent=0 // pred_check_branch
    %30 = sbr.rel (0) target = $region29
  $region28: #{flow_predictor_forward.1} parent=0 // pred_region
    _
  $region29: #{flow_predictor_forward.1} parent=0 // pred_fallthru
    _
  // Predicated region
  $region30: #{flow_predictor_forward.1} parent=0 // pred_check
    _
  $region31: #{flow_predictor_forward.1} parent=0 // pred_check_branch
    %32 = sbr.rel (0) target = $region33
  $region32: #{flow_predictor_forward.1} parent=0 // pred_region
    _
  $region33: #{flow_predictor_forward.1} parent=0 // pred_fallthru
    _
  // Predicated region
  $region34: #{flow_predictor_forward.1} parent=0 // pred_check
    _
  $region35: #{flow_predictor_forward.1} parent=0 // pred_check_branch
    %34 = sbr.rel (0) target = $region37
  $region36: #{flow_predictor_forward.1} parent=0 // pred_region
    _
  $region37: #{flow_predictor_forward.1} parent=0 // pred_fallthru
    _
  // Predicated region
  $region38: #{flow_predictor_forward.1} parent=0 // pred_check
    _
  $region39: #{flow_predictor_forward.1} parent=0 // pred_check_branch
    %36 = sbr.rel (0) target = $region41
  $region40: #{flow_predictor_forward.1} parent=0 // pred_region
    _
  $region41: #{flow_predictor_forward.1} parent=0 // pred_fallthru
    _
  // Predicated region
  $region42: #{flow_predictor_forward.1} parent=0 // pred_check
    _
  $region43: #{flow_predictor_forward.1} parent=0 // pred_check_branch
    %38 = sbr.rel (0) target = $region45
  $region44: #{flow_predictor_forward.1} parent=0 // pred_region
    _
  $region45: #{flow_predictor_forward.1} parent=0 // pred_fallthru
    _
  %v40 = vld [vmem:[%s7] sm:$0xf]
  %v41 = vld [vmem:[%s7 + $0x4] sm:$0xf]
  %v42 = vld [vmem:[%s7 + $0x8] sm:$0xf]
  %v43 = vld [vmem:[%s7 + $0xc] sm:$0xf]
  %v44 = vld [vmem:[%s7 + $0x10] sm:$0xf]
  %v45 = vld [vmem:[%s7 + $0x14] sm:$0xf]
  %v46 = vld [vmem:[%s7 + $0x18] sm:$0xf]
  %v47 = vld [vmem:[%s7 + $0x1c] sm:$0xf]
  %v48 = vld [vmem:[%s0] sm:$0x7]
  %v49 = vlaneseq
  %v50 = vshrl.u32 %v49, 7
  %v51 = vadd.s32 %v50, 8
  %v52 = vadd.s32 %v50, 16
  %v53 = vadd.s32 %v50, 24
  %v54 = vadd.s32 %v50, 32
  %v55 = vadd.s32 %v50, 40
  %v56 = vadd.s32 %v50, 48
  %v57 = vadd.s32 %v50, 56
  %v58 = vadd.s32 %v50, 64
  %v59 = vadd.s32 %v50, 72
  %v60 = vadd.s32 %v50, 80
  %v61 = vadd.s32 %v50, 88
  %v62 = vadd.s32 %v50, 96
  %v63 = vadd.s32 %v50, 104
  %v64 = vadd.s32 %v50, 112
  %v65 = vadd.s32 %v50, 120
  %v66 = vadd.s32 %v50, 128
  %v67 = vadd.s32 %v50, 136
  %v68 = vadd.s32 %v50, 144
  %v69 = vadd.s32 %v50, 152
  %v70 = vadd.s32 %v50, 160
  %v71 = vadd.s32 %v50, 168
  %v72 = vadd.s32 %v50, 176
  %v73 = vadd.s32 %v50, 184
  %v74 = vadd.s32 %v50, 192
  %v75 = vadd.s32 %v50, 200
  %v76 = vadd.s32 %v50, 208
  %v77 = vadd.s32 %v50, 216
  %v78 = vadd.s32 %v50, 224
  %v79 = vadd.s32 %v50, 232
  %v80 = vadd.s32 %v50, 240
  %v81 = vadd.s32 %v50, 248
  %v82 = vadd.s32 %v50, 256
  %v83 = vadd.s32 %v50, 264
  %v84 = vadd.s32 %v50, 272
  %v85 = vadd.s32 %v50, 280
  %v86 = vadd.s32 %v50, 288
  %v87 = vadd.s32 %v50, 296
  %v88 = vadd.s32 %v50, 304
  %v89 = vadd.s32 %v50, 312
  %v90 = vadd.s32 %v50, 320
  %v91 = vadd.s32 %v50, 328
  %v92 = vadd.s32 %v50, 336
  %v93 = vadd.s32 %v50, 344
  %v94 = vadd.s32 %v50, 352
  %v95 = vadd.s32 %v50, 360
  %v96 = vadd.s32 %v50, 368
  %v97 = vadd.s32 %v50, 376
  %v98 = vadd.s32 %v50, 384
  %v99 = vadd.s32 %v50, 392
  %v100 = vadd.s32 %v50, 400
  %v101 = vadd.s32 %v50, 408
  %v102 = vadd.s32 %v50, 416
  %v103 = vadd.s32 %v50, 424
  %v104 = vadd.s32 %v50, 432
  %v105 = vadd.s32 %v50, 440
  %v106 = vadd.s32 %v50, 448
  %v107 = vadd.s32 %v50, 456
  %v108 = vadd.s32 %v50, 464
  %v109 = vadd.s32 %v50, 472
  %v110 = vadd.s32 %v50, 480
  %v111 = vadd.s32 %v50, 488
  %v112 = vadd.s32 %v50, 496
  %v113 = vld [vmem:[%s1] sm:$0x1]
  %v114 = vlaneseq
  %v115 = vshrl.u32 %v114, 7
  %v116 = vsub.s32 0, %v115
  %v117 = vrot.slane %v113, %v116
  %vm118 = vcmp.eq.s32.totalorder %v50, %v117
  %vm119 = vcmp.eq.s32.totalorder %v51, %v117
  %vm120 = vcmp.eq.s32.totalorder %v52, %v117
  %vm121 = vcmp.eq.s32.totalorder %v53, %v117
  %vm122 = vcmp.eq.s32.totalorder %v54, %v117
  %vm123 = vcmp.eq.s32.totalorder %v55, %v117
  %vm124 = vcmp.eq.s32.totalorder %v56, %v117
  %vm125 = vcmp.eq.s32.totalorder %v57, %v117
  %vm126 = vcmp.eq.s32.totalorder %v58, %v117
  %vm127 = vcmp.eq.s32.totalorder %v59, %v117
  %vm128 = vcmp.eq.s32.totalorder %v60, %v117
  %vm129 = vcmp.eq.s32.totalorder %v61, %v117
  %vm130 = vcmp.eq.s32.totalorder %v62, %v117
  %vm131 = vcmp.eq.s32.totalorder %v63, %v117
  %vm132 = vcmp.eq.s32.totalorder %v64, %v117
  %vm133 = vcmp.eq.s32.totalorder %v65, %v117
  %vm134 = vcmp.eq.s32.totalorder %v66, %v117
  %vm135 = vcmp.eq.s32.totalorder %v67, %v117
  %vm136 = vcmp.eq.s32.totalorder %v68, %v117
  %vm137 = vcmp.eq.s32.totalorder %v69, %v117
  %vm138 = vcmp.eq.s32.totalorder %v70, %v117
  %vm139 = vcmp.eq.s32.totalorder %v71, %v117
  %vm140 = vcmp.eq.s32.totalorder %v72, %v117
  %vm141 = vcmp.eq.s32.totalorder %v73, %v117
  %vm142 = vcmp.eq.s32.totalorder %v74, %v117
  %vm143 = vcmp.eq.s32.totalorder %v75, %v117
  %vm144 = vcmp.eq.s32.totalorder %v76, %v117
  %vm145 = vcmp.eq.s32.totalorder %v77, %v117
  %vm146 = vcmp.eq.s32.totalorder %v78, %v117
  %vm147 = vcmp.eq.s32.totalorder %v79, %v117
  %vm148 = vcmp.eq.s32.totalorder %v80, %v117
  %vm149 = vcmp.eq.s32.totalorder %v81, %v117
  %vm150 = vcmp.eq.s32.totalorder %v82, %v117
  %vm151 = vcmp.eq.s32.totalorder %v83, %v117
  %vm152 = vcmp.eq.s32.totalorder %v84, %v117
  %vm153 = vcmp.eq.s32.totalorder %v85, %v117
  %vm154 = vcmp.eq.s32.totalorder %v86, %v117
  %vm155 = vcmp.eq.s32.totalorder %v87, %v117
  %vm156 = vcmp.eq.s32.totalorder %v88, %v117
  %vm157 = vcmp.eq.s32.totalorder %v89, %v117
  %vm158 = vcmp.eq.s32.totalorder %v90, %v117
  %vm159 = vcmp.eq.s32.totalorder %v91, %v117
  %vm160 = vcmp.eq.s32.totalorder %v92, %v117
  %vm161 = vcmp.eq.s32.totalorder %v93, %v117
  %vm162 = vcmp.eq.s32.totalorder %v94, %v117
  %vm163 = vcmp.eq.s32.totalorder %v95, %v117
  %vm164 = vcmp.eq.s32.totalorder %v96, %v117
  %vm165 = vcmp.eq.s32.totalorder %v97, %v117
  %vm166 = vcmp.eq.s32.totalorder %v98, %v117
  %vm167 = vcmp.eq.s32.totalorder %v99, %v117
  %vm168 = vcmp.eq.s32.totalorder %v100, %v117
  %vm169 = vcmp.eq.s32.totalorder %v101, %v117
  %vm170 = vcmp.eq.s32.totalorder %v102, %v117
  %vm171 = vcmp.eq.s32.totalorder %v103, %v117
  %vm172 = vcmp.eq.s32.totalorder %v104, %v117
  %vm173 = vcmp.eq.s32.totalorder %v105, %v117
  %vm174 = vcmp.eq.s32.totalorder %v106, %v117
  %vm175 = vcmp.eq.s32.totalorder %v107, %v117
  %vm176 = vcmp.eq.s32.totalorder %v108, %v117
  %vm177 = vcmp.eq.s32.totalorder %v109, %v117
  %vm178 = vcmp.eq.s32.totalorder %v110, %v117
  %vm179 = vcmp.eq.s32.totalorder %v111, %v117
  %vm180 = vcmp.eq.s32.totalorder %v112, %v117
  %v181 = vsel %vm118, 1, 0
  %v182 = vsel %vm119, 1, 0
  %v183 = vsel %vm120, 1, 0
  %v184 = vsel %vm121, 1, 0
  %v185 = vsel %vm122, 1, 0
  %v186 = vsel %vm123, 1, 0
  %v187 = vsel %vm124, 1, 0
  %v188 = vsel %vm125, 1, 0
  %v189 = vsel %vm126, 1, 0
  %v190 = vsel %vm127, 1, 0
  %v191 = vsel %vm128, 1, 0
  %v192 = vsel %vm129, 1, 0
  %v193 = vsel %vm130, 1, 0
  %v194 = vsel %vm131, 1, 0
  %v195 = vsel %vm132, 1, 0
  %v196 = vsel %vm133, 1, 0
  %v197 = vsel %vm134, 1, 0
  %v198 = vsel %vm135, 1, 0
  %v199 = vsel %vm136, 1, 0
  %v200 = vsel %vm137, 1, 0
  %v201 = vsel %vm138, 1, 0
  %v202 = vsel %vm139, 1, 0
  %v203 = vsel %vm140, 1, 0
  %v204 = vsel %vm141, 1, 0
  %v205 = vsel %vm142, 1, 0
  %v206 = vsel %vm143, 1, 0
  %v207 = vsel %vm144, 1, 0
  %v208 = vsel %vm145, 1, 0
  %v209 = vsel %vm146, 1, 0
  %v210 = vsel %vm147, 1, 0
  %v211 = vsel %vm148, 1, 0
  %v212 = vsel %vm149, 1, 0
  %v213 = vsel %vm150, 1, 0
  %v214 = vsel %vm151, 1, 0
  %v215 = vsel %vm152, 1, 0
  %v216 = vsel %vm153, 1, 0
  %v217 = vsel %vm154, 1, 0
  %v218 = vsel %vm155, 1, 0
  %v219 = vsel %vm156, 1, 0
  %v220 = vsel %vm157, 1, 0
  %v221 = vsel %vm158, 1, 0
  %v222 = vsel %vm159, 1, 0
  %v223 = vsel %vm160, 1, 0
  %v224 = vsel %vm161, 1, 0
  %v225 = vsel %vm162, 1, 0
  %v226 = vsel %vm163, 1, 0
  %v227 = vsel %vm164, 1, 0
  %v228 = vsel %vm165, 1, 0
  %v229 = vsel %vm166, 1, 0
  %v230 = vsel %vm167, 1, 0
  %v231 = vsel %vm168, 1, 0
  %v232 = vsel %vm169, 1, 0
  %v233 = vsel %vm170, 1, 0
  %v234 = vsel %vm171, 1, 0
  %v235 = vsel %vm172, 1, 0
  %v236 = vsel %vm173, 1, 0
  %v237 = vsel %vm174, 1, 0
  %v238 = vsel %vm175, 1, 0
  %v239 = vsel %vm176, 1, 0
  %v240 = vsel %vm177, 1, 0
  %v241 = vsel %vm178, 1, 0
  %v242 = vsel %vm179, 1, 0
  %v243 = vsel %vm180, 1, 0
  %v244 = vcvt.s32.f32 %v181
  %v245 = vcvt.s32.f32 %v182
  %v246 = vcvt.s32.f32 %v183
  %v247 = vcvt.s32.f32 %v184
  %v248 = vcvt.s32.f32 %v185
  %v249 = vcvt.s32.f32 %v186
  %v250 = vcvt.s32.f32 %v187
  %v251 = vcvt.s32.f32 %v188
  %v252 = vcvt.s32.f32 %v189
  %v253 = vcvt.s32.f32 %v190
  %v254 = vcvt.s32.f32 %v191
  %v255 = vcvt.s32.f32 %v192
  %v256 = vcvt.s32.f32 %v193
  %v257 = vcvt.s32.f32 %v194
  %v258 = vcvt.s32.f32 %v195
  %v259 = vcvt.s32.f32 %v196
  %v260 = vcvt.s32.f32 %v197
  %v261 = vcvt.s32.f32 %v198
  %v262 = vcvt.s32.f32 %v199
  %v263 = vcvt.s32.f32 %v200
  %v264 = vcvt.s32.f32 %v201
  %v265 = vcvt.s32.f32 %v202
  %v266 = vcvt.s32.f32 %v203
  %v267 = vcvt.s32.f32 %v204
  %v268 = vcvt.s32.f32 %v205
  %v269 = vcvt.s32.f32 %v206
  %v270 = vcvt.s32.f32 %v207
  %v271 = vcvt.s32.f32 %v208
  %v272 = vcvt.s32.f32 %v209
  %v273 = vcvt.s32.f32 %v210
  %v274 = vcvt.s32.f32 %v211
  %v275 = vcvt.s32.f32 %v212
  %v276 = vcvt.s32.f32 %v213
  %v277 = vcvt.s32.f32 %v214
  %v278 = vcvt.s32.f32 %v215
  %v279 = vcvt.s32.f32 %v216
  %v280 = vcvt.s32.f32 %v217
  %v281 = vcvt.s32.f32 %v218
  %v282 = vcvt.s32.f32 %v219
  %v283 = vcvt.s32.f32 %v220
  %v284 = vcvt.s32.f32 %v221
  %v285 = vcvt.s32.f32 %v222
  %v286 = vcvt.s32.f32 %v223
  %v287 = vcvt.s32.f32 %v224
  %v288 = vcvt.s32.f32 %v225
  %v289 = vcvt.s32.f32 %v226
  %v290 = vcvt.s32.f32 %v227
  %v291 = vcvt.s32.f32 %v228
  %v292 = vcvt.s32.f32 %v229
  %v293 = vcvt.s32.f32 %v230
  %v294 = vcvt.s32.f32 %v231
  %v295 = vcvt.s32.f32 %v232
  %v296 = vcvt.s32.f32 %v233
  %v297 = vcvt.s32.f32 %v234
  %v298 = vcvt.s32.f32 %v235
  %v299 = vcvt.s32.f32 %v236
  %v300 = vcvt.s32.f32 %v237
  %v301 = vcvt.s32.f32 %v238
  %v302 = vcvt.s32.f32 %v239
  %v303 = vcvt.s32.f32 %v240
  %v304 = vcvt.s32.f32 %v241
  %v305 = vcvt.s32.f32 %v242
  %v306 = vcvt.s32.f32 %v243
  %v307 = vpack.c.bf16 %v245, %v244
  %v308 = vpack.c.bf16 %v247, %v246
  %v309 = vpack.c.bf16 %v249, %v248
  %v310 = vpack.c.bf16 %v251, %v250
  %v311 = vpack.c.bf16 %v253, %v252
  %v312 = vpack.c.bf16 %v255, %v254
  %v313 = vpack.c.bf16 %v257, %v256
  %v314 = vpack.c.bf16 %v259, %v258
  %v315 = vpack.c.bf16 %v261, %v260
  %v316 = vpack.c.bf16 %v263, %v262
  %v317 = vpack.c.bf16 %v265, %v264
  %v318 = vpack.c.bf16 %v267, %v266
  %v319 = vpack.c.bf16 %v269, %v268
  %v320 = vpack.c.bf16 %v271, %v270
  %v321 = vpack.c.bf16 %v273, %v272
  %v322 = vpack.c.bf16 %v275, %v274
  %v323 = vpack.c.bf16 %v277, %v276
  %v324 = vpack.c.bf16 %v279, %v278
  %v325 = vpack.c.bf16 %v281, %v280
  %v326 = vpack.c.bf16 %v283, %v282
  %v327 = vpack.c.bf16 %v285, %v284
  %v328 = vpack.c.bf16 %v287, %v286
  %v329 = vpack.c.bf16 %v289, %v288
  %v330 = vpack.c.bf16 %v291, %v290
  %v331 = vpack.c.bf16 %v293, %v292
  %v332 = vpack.c.bf16 %v295, %v294
  %v333 = vpack.c.bf16 %v297, %v296
  %v334 = vpack.c.bf16 %v299, %v298
  %v335 = vpack.c.bf16 %v301, %v300
  %v336 = vpack.c.bf16 %v303, %v302
  %v337 = vpack.c.bf16 %v305, %v304
  %v338 = vpack.c.bf16 %v306, %v306
  %v339 = vld [vmem:[%s4] sm:$0xff]
  %v340 = vld [vmem:[%s4 + $0x8] sm:$0xff]
  %v341 = vld [vmem:[%s4 + $0x10] sm:$0xff]
  %v342 = vld [vmem:[%s4 + $0x18] sm:$0xff]
  %v343 = vld [vmem:[%s4 + $0x20] sm:$0xff]
  %v344 = vld [vmem:[%s4 + $0x28] sm:$0xff]
  %v345 = vld [vmem:[%s4 + $0x30] sm:$0xff]
  %v346 = vld [vmem:[%s4 + $0x38] sm:$0xff]
  %v347 = vld [vmem:[%s4 + $0x40] sm:$0xff]
  %v348 = vld [vmem:[%s4 + $0x48] sm:$0xff]
  %v349 = vld [vmem:[%s4 + $0x50] sm:$0xff]
  %v350 = vld [vmem:[%s4 + $0x58] sm:$0xff]
  %v351 = vld [vmem:[%s4 + $0x60] sm:$0xff]
  %v352 = vld [vmem:[%s4 + $0x68] sm:$0xff]
  %v353 = vld [vmem:[%s4 + $0x70] sm:$0xff]
  %v354 = vld [vmem:[%s4 + $0x78] sm:$0xff]
  %v371 = vunpack.c.l.b16 %v339
  %v372 = vunpack.c.h.b16 %v339
  %v373 = vunpack.c.l.b16 %v340
  %v374 = vunpack.c.h.b16 %v340
  %v375 = vunpack.c.l.b16 %v341
  %v376 = vunpack.c.h.b16 %v341
  %v377 = vunpack.c.l.b16 %v342
  %v378 = vunpack.c.h.b16 %v342
  %v379 = vunpack.c.l.b16 %v343
  %v380 = vunpack.c.h.b16 %v343
  %v381 = vunpack.c.l.b16 %v344
  %v382 = vunpack.c.h.b16 %v344
  %v383 = vunpack.c.l.b16 %v345
  %v384 = vunpack.c.h.b16 %v345
  %v385 = vunpack.c.l.b16 %v346
  %v386 = vunpack.c.h.b16 %v346
  %v387 = vunpack.c.l.b16 %v347
  %v388 = vunpack.c.h.b16 %v347
  %v389 = vunpack.c.l.b16 %v348
  %v390 = vunpack.c.h.b16 %v348
  %v391 = vunpack.c.l.b16 %v349
  %v392 = vunpack.c.h.b16 %v349
  %v393 = vunpack.c.l.b16 %v350
  %v394 = vunpack.c.h.b16 %v350
  %v395 = vunpack.c.l.b16 %v351
  %v396 = vunpack.c.h.b16 %v351
  %v397 = vunpack.c.l.b16 %v352
  %v398 = vunpack.c.h.b16 %v352
  %v399 = vunpack.c.l.b16 %v353
  %v400 = vunpack.c.h.b16 %v353
  %v401 = vunpack.c.l.b16 %v354
  %v402 = vunpack.c.h.b16 %v354
  %v403 = vpack.c.b16 %v375, %v371
  %v404 = vpack.c.b16 %v376, %v372
  %v405 = vpack.c.b16 %v377, %v373
  %v406 = vpack.c.b16 %v378, %v374
  %v407 = vpack.c.b16 %v383, %v379
  %v408 = vpack.c.b16 %v384, %v380
  %v409 = vpack.c.b16 %v385, %v381
  %v410 = vpack.c.b16 %v386, %v382
  %v411 = vpack.c.b16 %v391, %v387
  %v412 = vpack.c.b16 %v392, %v388
  %v413 = vpack.c.b16 %v393, %v389
  %v414 = vpack.c.b16 %v394, %v390
  %v415 = vpack.c.b16 %v399, %v395
  %v416 = vpack.c.b16 %v400, %v396
  %v417 = vpack.c.b16 %v401, %v397
  %v418 = vpack.c.b16 %v402, %v398
  %vm431 = vcmask 982016
  %v433 = vsel %vm431, %v406, 0
  %v436 = vsel %vm431, %v410, 0
  %v439 = vsel %vm431, %v414, 0
  %v442 = vsel %vm431, %v418, 0
  %vm444 = vcmask 1043456
  %v446 = vsel %vm444, %v338, 0
  %448 = vmatprep.subr.bf16.mxu0 0
  %449 = vmatpush1.bf16.msra.mxu0 %v307
  %450 = vmatprep.subr.bf16.mxu0 0
  %451 = vmatpush1.bf16.msra.mxu0 %v308
  %452 = vmatprep.subr.bf16.mxu0 0
  %453 = vmatpush1.bf16.msra.mxu0 %v309
  %454 = vmatprep.subr.bf16.mxu0 0
  %455 = vmatpush1.bf16.msra.mxu0 %v310
  %456 = vmatprep.subr.bf16.mxu0 0
  %457 = vmatpush1.bf16.msra.mxu0 %v311
  %458 = vmatprep.subr.bf16.mxu0 0
  %459 = vmatpush1.bf16.msra.mxu0 %v312
  %460 = vmatprep.subr.bf16.mxu0 0
  %461 = vmatpush1.bf16.msra.mxu0 %v313
  %462 = vmatprep.subr.bf16.mxu0 0
  %463 = vmatpush1.bf16.msra.mxu0 %v314
  %464 = vmatprep.subr.bf16.mxu0 0
  %465 = vmatpush1.bf16.msra.mxu0 %v315
  %466 = vmatprep.subr.bf16.mxu0 0
  %467 = vmatpush1.bf16.msra.mxu0 %v316
  %468 = vmatprep.subr.bf16.mxu0 0
  %469 = vmatpush1.bf16.msra.mxu0 %v317
  %470 = vmatprep.subr.bf16.mxu0 0
  %471 = vmatpush1.bf16.msra.mxu0 %v318
  %472 = vmatprep.subr.bf16.mxu0 0
  %473 = vmatpush1.bf16.msra.mxu0 %v319
  %474 = vmatprep.subr.bf16.mxu0 0
  %475 = vmatpush1.bf16.msra.mxu0 %v320
  %476 = vmatprep.subr.bf16.mxu0 0
  %477 = vmatpush1.bf16.msra.mxu0 %v321
  %478 = vmatprep.subr.bf16.mxu0 0
  %479 = vmatpush1.bf16.msra.mxu0 %v322
  %480 = vmatprep.mubr.bf16.mxu0 %v404
  %481 = vmatmul.mubr.bf16.gmra.mrb[0].mxu0 %v403
  %v482 = vpop.f32.mrb[0].mxu0
  %v483 = vadd.f32 0.0, %v482
  %v484 = vpop.f32.mrb[0].mxu0
  %v485 = vpop.f32.mrb[0].mxu0
  %v486 = vadd.f32 0.0, %v485
  %v487 = vpop.f32.mrb[0].mxu0
  %488 = vmatprep.mubr.bf16.mxu0 %v408
  %489 = vmatmul.mubr.bf16.gmra.mrb[0].mxu0 %v407
  %v490 = vpop.f32.mrb[0].mxu0
  %v491 = vadd.f32 0.0, %v490
  %v492 = vpop.f32.mrb[0].mxu0
  %v493 = vpop.f32.mrb[0].mxu0
  %v494 = vadd.f32 0.0, %v493
  %v495 = vpop.f32.mrb[0].mxu0
  %496 = vmatprep.mubr.bf16.mxu0 %v412
  %497 = vmatmul.mubr.bf16.gmra.mrb[0].mxu0 %v411
  %v498 = vpop.f32.mrb[0].mxu0
  %v499 = vadd.f32 0.0, %v498
  %v500 = vpop.f32.mrb[0].mxu0
  %v501 = vpop.f32.mrb[0].mxu0
  %v502 = vadd.f32 0.0, %v501
  %v503 = vpop.f32.mrb[0].mxu0
  %504 = vmatprep.mubr.bf16.mxu0 %v416
  %505 = vmatmul.mubr.bf16.gmra.mrb[0].mxu0 %v415
  %v506 = vpop.f32.mrb[0].mxu0
  %v507 = vadd.f32 0.0, %v506
  %v508 = vpop.f32.mrb[0].mxu0
  %v509 = vpop.f32.mrb[0].mxu0
  %v510 = vadd.f32 0.0, %v509
  %v511 = vpop.f32.mrb[0].mxu0
  %512 = vdwg.mxu0
  %513 = vmatprep.subr.bf16.mxu0 0
  %514 = vmatpush1.bf16.msra.mxu0 %v323
  %515 = vmatprep.subr.bf16.mxu0 0
  %516 = vmatpush1.bf16.msra.mxu0 %v324
  %517 = vmatprep.subr.bf16.mxu0 0
  %518 = vmatpush1.bf16.msra.mxu0 %v325
  %519 = vmatprep.subr.bf16.mxu0 0
  %520 = vmatpush1.bf16.msra.mxu0 %v326
  %521 = vmatprep.subr.bf16.mxu0 0
  %522 = vmatpush1.bf16.msra.mxu0 %v327
  %523 = vmatprep.subr.bf16.mxu0 0
  %524 = vmatpush1.bf16.msra.mxu0 %v328
  %525 = vmatprep.subr.bf16.mxu0 0
  %526 = vmatpush1.bf16.msra.mxu0 %v329
  %527 = vmatprep.subr.bf16.mxu0 0
  %528 = vmatpush1.bf16.msra.mxu0 %v330
  %529 = vmatprep.subr.bf16.mxu0 0
  %530 = vmatpush1.bf16.msra.mxu0 %v331
  %531 = vmatprep.subr.bf16.mxu0 0
  %532 = vmatpush1.bf16.msra.mxu0 %v332
  %533 = vmatprep.subr.bf16.mxu0 0
  %534 = vmatpush1.bf16.msra.mxu0 %v333
  %535 = vmatprep.subr.bf16.mxu0 0
  %536 = vmatpush1.bf16.msra.mxu0 %v334
  %537 = vmatprep.subr.bf16.mxu0 0
  %538 = vmatpush1.bf16.msra.mxu0 %v335
  %539 = vmatprep.subr.bf16.mxu0 0
  %540 = vmatpush1.bf16.msra.mxu0 %v336
  %541 = vmatprep.subr.bf16.mxu0 0
  %542 = vmatpush1.bf16.msra.mxu0 %v337
  %543 = vmatprep.subr.bf16.mxu0 0
  %544 = vmatpush1.bf16.msra.mxu0 %v446
  %545 = vmatprep.mubr.bf16.mxu0 %v433
  %546 = vmatmul.mubr.bf16.gmra.mrb[0].mxu0 %v405
  %v547 = vpop.f32.mrb[0].mxu0
  %v548 = vadd.f32 %v483, %v547
  %v549 = vpop.f32.mrb[0].mxu0
  %v550 = vpop.f32.mrb[0].mxu0
  %v551 = vadd.f32 %v486, %v550
  %v552 = vpop.f32.mrb[0].mxu0
  %553 = vmatprep.mubr.bf16.mxu0 %v436
  %554 = vmatmul.mubr.bf16.gmra.mrb[0].mxu0 %v409
  %v555 = vpop.f32.mrb[0].mxu0
  %v556 = vadd.f32 %v491, %v555
  %v557 = vpop.f32.mrb[0].mxu0
  %v558 = vpop.f32.mrb[0].mxu0
  %v559 = vadd.f32 %v494, %v558
  %v560 = vpop.f32.mrb[0].mxu0
  %561 = vmatprep.mubr.bf16.mxu0 %v439
  %562 = vmatmul.mubr.bf16.gmra.mrb[0].mxu0 %v413
  %v563 = vpop.f32.mrb[0].mxu0
  %v564 = vadd.f32 %v499, %v563
  %v565 = vpop.f32.mrb[0].mxu0
  %v566 = vpop.f32.mrb[0].mxu0
  %v567 = vadd.f32 %v502, %v566
  %v568 = vpop.f32.mrb[0].mxu0
  %569 = vmatprep.mubr.bf16.mxu0 %v442
  %570 = vmatmul.mubr.bf16.gmra.mrb[0].mxu0 %v417
  %v571 = vpop.f32.mrb[0].mxu0
  %v572 = vadd.f32 %v507, %v571
  %v573 = vpop.f32.mrb[0].mxu0
  %v574 = vpop.f32.mrb[0].mxu0
  %v575 = vadd.f32 %v510, %v574
  %v576 = vpop.f32.mrb[0].mxu0
  %577 = vdwg.mxu0
  %v586 = vunpack.c.l.b16 %v40
  %v587 = vunpack.c.l.b16 %v41
  %v588 = vunpack.c.l.b16 %v42
  %v589 = vunpack.c.l.b16 %v43
  %v590 = vunpack.c.l.b16 %v44
  %v591 = vunpack.c.l.b16 %v45
  %v592 = vunpack.c.l.b16 %v46
  %v593 = vunpack.c.l.b16 %v47
  %v594 = vpack.c.b16 %v587, %v586
  %v595 = vpack.c.b16 %v589, %v588
  %v596 = vpack.c.b16 %v591, %v590
  %v597 = vpack.c.b16 %v593, %v592
  %vm598 = vcmask 48128
  %v600 = vsel %vm598, %v594, 0
  %v603 = vsel %vm598, %v595, 0
  %v606 = vsel %vm598, %v596, 0
  %v609 = vsel %vm598, %v597, 0
  %vm611 = vcmask 1042432
  %v613 = vsel %vm611, %v48, 0
  %615 = vmatprep.subr.bf16.mxu0 0
  %616 = vmatpush1.bf16.msra.mxu0 %v613
  %617 = vmatprep.subr.bf16.mxu0 0
  %618 = vmatpush1.bf16.msra.mxu0 0
  %619 = vmatprep.subr.bf16.mxu0 0
  %620 = vmatpush1.bf16.msra.mxu0 0
  %621 = vmatprep.subr.bf16.mxu0 0
  %622 = vmatpush1.bf16.msra.mxu0 0
  %623 = vmatprep.subr.bf16.mxu0 0
  %624 = vmatpush1.bf16.msra.mxu0 0
  %625 = vmatprep.subr.bf16.mxu0 0
  %626 = vmatpush1.bf16.msra.mxu0 0
  %627 = vmatprep.subr.bf16.mxu0 0
  %628 = vmatpush1.bf16.msra.mxu0 0
  %629 = vmatprep.subr.bf16.mxu0 0
  %630 = vmatpush1.bf16.msra.mxu0 0
  %631 = vmatprep.subr.bf16.mxu0 0
  %632 = vmatpush1.bf16.msra.mxu0 0
  %633 = vmatprep.subr.bf16.mxu0 0
  %634 = vmatpush1.bf16.msra.mxu0 0
  %635 = vmatprep.subr.bf16.mxu0 0
  %636 = vmatpush1.bf16.msra.mxu0 0
  %637 = vmatprep.subr.bf16.mxu0 0
  %638 = vmatpush1.bf16.msra.mxu0 0
  %639 = vmatprep.subr.bf16.mxu0 0
  %640 = vmatpush1.bf16.msra.mxu0 0
  %641 = vmatprep.subr.bf16.mxu0 0
  %642 = vmatpush1.bf16.msra.mxu0 0
  %643 = vmatprep.subr.bf16.mxu0 0
  %644 = vmatpush1.bf16.msra.mxu0 0
  %645 = vmatprep.subr.bf16.mxu0 0
  %646 = vmatpush1.bf16.msra.mxu0 0
  %647 = vmatprep.mubr.bf16.mxu0 0
  %648 = vmatmul.mubr.bf16.gmra.mrb[0].mxu0 %v600
  %v649 = vpop.f32.mrb[0].mxu0
  %v650 = vadd.f32 %v548, %v649
  %v651 = vpop.f32.mrb[0].mxu0
  %v652 = vpop.f32.mrb[0].mxu0
  %v653 = vadd.f32 %v551, %v652
  %v654 = vpop.f32.mrb[0].mxu0
  %655 = vmatprep.mubr.bf16.mxu0 0
  %656 = vmatmul.mubr.bf16.gmra.mrb[0].mxu0 %v603
  %v657 = vpop.f32.mrb[0].mxu0
  %v658 = vadd.f32 %v556, %v657
  %v659 = vpop.f32.mrb[0].mxu0
  %v660 = vpop.f32.mrb[0].mxu0
  %v661 = vadd.f32 %v559, %v660
  %v662 = vpop.f32.mrb[0].mxu0
  %663 = vmatprep.mubr.bf16.mxu0 0
  %664 = vmatmul.mubr.bf16.gmra.mrb[0].mxu0 %v606
  %v665 = vpop.f32.mrb[0].mxu0
  %v666 = vadd.f32 %v564, %v665
  %v667 = vpop.f32.mrb[0].mxu0
  %v668 = vpop.f32.mrb[0].mxu0
  %v669 = vadd.f32 %v567, %v668
  %v670 = vpop.f32.mrb[0].mxu0
  %671 = vmatprep.mubr.bf16.mxu0 0
  %672 = vmatmul.mubr.bf16.gmra.mrb[0].mxu0 %v609
  %v673 = vpop.f32.mrb[0].mxu0
  %v674 = vadd.f32 %v572, %v673
  %v675 = vpop.f32.mrb[0].mxu0
  %v676 = vpop.f32.mrb[0].mxu0
  %v677 = vadd.f32 %v575, %v676
  %v678 = vpop.f32.mrb[0].mxu0
  %679 = vdwg.mxu0
  %v680 = vld [vmem:[%s2] sm:$0x1]
  %v681 = vlaneseq
  %v682 = vshrl.u32 %v681, 7
  %v683 = vsub.s32 0, %v682
  %v684 = vrot.slane %v680, %v683
  %vm685 = vcmp.eq.s32.totalorder %v50, %v684
  %vm686 = vcmp.eq.s32.totalorder %v51, %v684
  %v687 = vsel %vm685, 1, 0
  %v688 = vsel %vm686, 1, 0
  %v689 = vcvt.s32.f32 %v687
  %v690 = vcvt.s32.f32 %v688
  %v691 = vpack.c.bf16 %v690, %v689
  %v692 = vld [vmem:[%s5] sm:$0xf]
  %v693 = vld [vmem:[%s5 + $0x4] sm:$0xf]
  %v694 = vld [vmem:[%s5 + $0x8] sm:$0xf]
  %v695 = vld [vmem:[%s5 + $0xc] sm:$0xf]
  %v696 = vld [vmem:[%s5 + $0x10] sm:$0xf]
  %v697 = vld [vmem:[%s5 + $0x14] sm:$0xf]
  %v698 = vld [vmem:[%s5 + $0x18] sm:$0xf]
  %v699 = vld [vmem:[%s5 + $0x1c] sm:$0xf]
  %v708 = vunpack.c.l.b16 %v692
  %v709 = vunpack.c.l.b16 %v693
  %v710 = vunpack.c.l.b16 %v694
  %v711 = vunpack.c.l.b16 %v695
  %v712 = vunpack.c.l.b16 %v696
  %v713 = vunpack.c.l.b16 %v697
  %v714 = vunpack.c.l.b16 %v698
  %v715 = vunpack.c.l.b16 %v699
  %v716 = vpack.c.b16 %v709, %v708
  %v717 = vpack.c.b16 %v711, %v710
  %v718 = vpack.c.b16 %v713, %v712
  %v719 = vpack.c.b16 %v715, %v714
  %vm720 = vcmask 130048
  %v722 = vsel %vm720, %v716, 0
  %v725 = vsel %vm720, %v717, 0
  %v728 = vsel %vm720, %v718, 0
  %v731 = vsel %vm720, %v719, 0
  %733 = vmatprep.subr.bf16.mxu0 0
  %734 = vmatpush1.bf16.msra.mxu0 %v691
  %735 = vmatprep.subr.bf16.mxu0 0
  %736 = vmatpush1.bf16.msra.mxu0 0
  %737 = vmatprep.subr.bf16.mxu0 0
  %738 = vmatpush1.bf16.msra.mxu0 0
  %739 = vmatprep.subr.bf16.mxu0 0
  %740 = vmatpush1.bf16.msra.mxu0 0
  %741 = vmatprep.subr.bf16.mxu0 0
  %742 = vmatpush1.bf16.msra.mxu0 0
  %743 = vmatprep.subr.bf16.mxu0 0
  %744 = vmatpush1.bf16.msra.mxu0 0
  %745 = vmatprep.subr.bf16.mxu0 0
  %746 = vmatpush1.bf16.msra.mxu0 0
  %747 = vmatprep.subr.bf16.mxu0 0
  %748 = vmatpush1.bf16.msra.mxu0 0
  %749 = vmatprep.subr.bf16.mxu0 0
  %750 = vmatpush1.bf16.msra.mxu0 0
  %751 = vmatprep.subr.bf16.mxu0 0
  %752 = vmatpush1.bf16.msra.mxu0 0
  %753 = vmatprep.subr.bf16.mxu0 0
  %754 = vmatpush1.bf16.msra.mxu0 0
  %755 = vmatprep.subr.bf16.mxu0 0
  %756 = vmatpush1.bf16.msra.mxu0 0
  %757 = vmatprep.subr.bf16.mxu0 0
  %758 = vmatpush1.bf16.msra.mxu0 0
  %759 = vmatprep.subr.bf16.mxu0 0
  %760 = vmatpush1.bf16.msra.mxu0 0
  %761 = vmatprep.subr.bf16.mxu0 0
  %762 = vmatpush1.bf16.msra.mxu0 0
  %763 = vmatprep.subr.bf16.mxu0 0
  %764 = vmatpush1.bf16.msra.mxu0 0
  %765 = vmatprep.mubr.bf16.mxu0 0
  %766 = vmatmul.mubr.bf16.gmra.mrb[0].mxu0 %v722
  %v767 = vpop.f32.mrb[0].mxu0
  %v768 = vadd.f32 0.0, %v767
  %v769 = vpop.f32.mrb[0].mxu0
  %v770 = vpop.f32.mrb[0].mxu0
  %v771 = vadd.f32 0.0, %v770
  %v772 = vpop.f32.mrb[0].mxu0
  %773 = vmatprep.mubr.bf16.mxu0 0
  %774 = vmatmul.mubr.bf16.gmra.mrb[0].mxu0 %v725
  %v775 = vpop.f32.mrb[0].mxu0
  %v776 = vadd.f32 0.0, %v775
  %v777 = vpop.f32.mrb[0].mxu0
  %v778 = vpop.f32.mrb[0].mxu0
  %v779 = vadd.f32 0.0, %v778
  %v780 = vpop.f32.mrb[0].mxu0
  %781 = vmatprep.mubr.bf16.mxu0 0
  %782 = vmatmul.mubr.bf16.gmra.mrb[0].mxu0 %v728
  %v783 = vpop.f32.mrb[0].mxu0
  %v784 = vadd.f32 0.0, %v783
  %v785 = vpop.f32.mrb[0].mxu0
  %v786 = vpop.f32.mrb[0].mxu0
  %v787 = vadd.f32 0.0, %v786
  %v788 = vpop.f32.mrb[0].mxu0
  %789 = vmatprep.mubr.bf16.mxu0 0
  %790 = vmatmul.mubr.bf16.gmra.mrb[0].mxu0 %v731
  %v791 = vpop.f32.mrb[0].mxu0
  %v792 = vadd.f32 0.0, %v791
  %v793 = vpop.f32.mrb[0].mxu0
  %v794 = vpop.f32.mrb[0].mxu0
  %v795 = vadd.f32 0.0, %v794
  %v796 = vpop.f32.mrb[0].mxu0
  %797 = vdwg.mxu0
  %v798 = vadd.f32 %v650, %v768
  %v799 = vadd.f32 %v653, %v771
  %v800 = vadd.f32 %v658, %v776
  %v801 = vadd.f32 %v661, %v779
  %v802 = vadd.f32 %v666, %v784
  %v803 = vadd.f32 %v669, %v787
  %v804 = vadd.f32 %v674, %v792
  %v805 = vadd.f32 %v677, %v795
  %v806 = vld [vmem:[%s3] sm:$0x1]
  %v807 = vlaneseq
  %v808 = vshrl.u32 %v807, 7
  %v809 = vsub.s32 0, %v808
  %v810 = vrot.slane %v806, %v809
  %vm811 = vcmp.eq.s32.totalorder %v50, %v810
  %vm812 = vcmp.eq.s32.totalorder %v51, %v810
  %vm813 = vcmp.eq.s32.totalorder %v52, %v810
  %v814 = vsel %vm811, 1, 0
  %v815 = vsel %vm812, 1, 0
  %v816 = vsel %vm813, 1, 0
  %v817 = vcvt.s32.f32 %v814
  %v818 = vcvt.s32.f32 %v815
  %v819 = vcvt.s32.f32 %v816
  %v820 = vpack.c.bf16 %v818, %v817
  %v821 = vpack.c.bf16 %v819, %v819
  %v822 = vld [vmem:[%s6] sm:$0xf]
  %v823 = vld [vmem:[%s6 + $0x4] sm:$0xf]
  %v824 = vld [vmem:[%s6 + $0x8] sm:$0xf]
  %v825 = vld [vmem:[%s6 + $0xc] sm:$0xf]
  %v826 = vld [vmem:[%s6 + $0x10] sm:$0xf]
  %v827 = vld [vmem:[%s6 + $0x14] sm:$0xf]
  %v828 = vld [vmem:[%s6 + $0x18] sm:$0xf]
  %v829 = vld [vmem:[%s6 + $0x1c] sm:$0xf]
  %v838 = vunpack.c.l.b16 %v822
  %v839 = vunpack.c.l.b16 %v823
  %v840 = vunpack.c.l.b16 %v824
  %v841 = vunpack.c.l.b16 %v825
  %v842 = vunpack.c.l.b16 %v826
  %v843 = vunpack.c.l.b16 %v827
  %v844 = vunpack.c.l.b16 %v828
  %v845 = vunpack.c.l.b16 %v829
  %v846 = vpack.c.b16 %v839, %v838
  %v847 = vpack.c.b16 %v841, %v840
  %v848 = vpack.c.b16 %v843, %v842
  %v849 = vpack.c.b16 %v845, %v844
  %vm850 = vcmask 195584
  %v852 = vsel %vm850, %v846, 0
  %v855 = vsel %vm850, %v847, 0
  %v858 = vsel %vm850, %v848, 0
  %v861 = vsel %vm850, %v849, 0
  %v864 = vsel %vm444, %v821, 0
  %866 = vmatprep.subr.bf16.mxu0 0
  %867 = vmatpush1.bf16.msra.mxu0 %v820
  %868 = vmatprep.subr.bf16.mxu0 0
  %869 = vmatpush1.bf16.msra.mxu0 %v864
  %870 = vmatprep.subr.bf16.mxu0 0
  %871 = vmatpush1.bf16.msra.mxu0 0
  %872 = vmatprep.subr.bf16.mxu0 0
  %873 = vmatpush1.bf16.msra.mxu0 0
  %874 = vmatprep.subr.bf16.mxu0 0
  %875 = vmatpush1.bf16.msra.mxu0 0
  %876 = vmatprep.subr.bf16.mxu0 0
  %877 = vmatpush1.bf16.msra.mxu0 0
  %878 = vmatprep.subr.bf16.mxu0 0
  %879 = vmatpush1.bf16.msra.mxu0 0
  %880 = vmatprep.subr.bf16.mxu0 0
  %881 = vmatpush1.bf16.msra.mxu0 0
  %882 = vmatprep.subr.bf16.mxu0 0
  %883 = vmatpush1.bf16.msra.mxu0 0
  %884 = vmatprep.subr.bf16.mxu0 0
  %885 = vmatpush1.bf16.msra.mxu0 0
  %886 = vmatprep.subr.bf16.mxu0 0
  %887 = vmatpush1.bf16.msra.mxu0 0
  %888 = vmatprep.subr.bf16.mxu0 0
  %889 = vmatpush1.bf16.msra.mxu0 0
  %890 = vmatprep.subr.bf16.mxu0 0
  %891 = vmatpush1.bf16.msra.mxu0 0
  %892 = vmatprep.subr.bf16.mxu0 0
  %893 = vmatpush1.bf16.msra.mxu0 0
  %894 = vmatprep.subr.bf16.mxu0 0
  %895 = vmatpush1.bf16.msra.mxu0 0
  %896 = vmatprep.subr.bf16.mxu0 0
  %897 = vmatpush1.bf16.msra.mxu0 0
  %898 = vmatprep.mubr.bf16.mxu0 0
  %899 = vmatmul.mubr.bf16.gmra.mrb[0].mxu0 %v852
  %v900 = vpop.f32.mrb[0].mxu0
  %v901 = vadd.f32 0.0, %v900
  %v902 = vpop.f32.mrb[0].mxu0
  %v903 = vpop.f32.mrb[0].mxu0
  %v904 = vadd.f32 0.0, %v903
  %v905 = vpop.f32.mrb[0].mxu0
  %906 = vmatprep.mubr.bf16.mxu0 0
  %907 = vmatmul.mubr.bf16.gmra.mrb[0].mxu0 %v855
  %v908 = vpop.f32.mrb[0].mxu0
  %v909 = vadd.f32 0.0, %v908
  %v910 = vpop.f32.mrb[0].mxu0
  %v911 = vpop.f32.mrb[0].mxu0
  %v912 = vadd.f32 0.0, %v911
  %v913 = vpop.f32.mrb[0].mxu0
  %914 = vmatprep.mubr.bf16.mxu0 0
  %915 = vmatmul.mubr.bf16.gmra.mrb[0].mxu0 %v858
  %v916 = vpop.f32.mrb[0].mxu0
  %v917 = vadd.f32 0.0, %v916
  %v918 = vpop.f32.mrb[0].mxu0
  %v919 = vpop.f32.mrb[0].mxu0
  %v920 = vadd.f32 0.0, %v919
  %v921 = vpop.f32.mrb[0].mxu0
  %922 = vmatprep.mubr.bf16.mxu0 0
  %923 = vmatmul.mubr.bf16.gmra.mrb[0].mxu0 %v861
  %v924 = vpop.f32.mrb[0].mxu0
  %v925 = vadd.f32 0.0, %v924
  %v926 = vpop.f32.mrb[0].mxu0
  %v927 = vpop.f32.mrb[0].mxu0
  %v928 = vadd.f32 0.0, %v927
  %v929 = vpop.f32.mrb[0].mxu0
  %930 = vdwg.mxu0
  %v931 = vadd.f32 %v798, %v901
  %v932 = vadd.f32 %v799, %v904
  %v933 = vadd.f32 %v800, %v909
  %v934 = vadd.f32 %v801, %v912
  %v935 = vadd.f32 %v802, %v917
  %v936 = vadd.f32 %v803, %v920
  %v937 = vadd.f32 %v804, %v925
  %v938 = vadd.f32 %v805, %v928
  %v939 = vld [vmem:[%s8] sm:$0xff]
  %v940 = vld [vmem:[%s8 + $0x8] sm:$0xff]
  %v941 = vld [vmem:[%s8 + $0x10] sm:$0xff]
  %v942 = vld [vmem:[%s8 + $0x18] sm:$0xff]
  %v943 = vld [vmem:[%s8 + $0x20] sm:$0xff]
  %v944 = vld [vmem:[%s8 + $0x28] sm:$0xff]
  %v945 = vld [vmem:[%s8 + $0x30] sm:$0xff]
  %v946 = vld [vmem:[%s8 + $0x38] sm:$0xff]
  %948 = vset.pattern.permute.xlu0 0
  %949 = vperm.xlu0 %948, %v939
  %v950 = vpop.permute.xlu0 %949
  %953 = vset.pattern.permute.xlu0 0
  %954 = vperm.xlu0 %953, %v940
  %v955 = vpop.permute.xlu0 %954
  %958 = vset.pattern.permute.xlu0 0
  %959 = vperm.xlu0 %958, %v941
  %v960 = vpop.permute.xlu0 %959
  %963 = vset.pattern.permute.xlu0 0
  %964 = vperm.xlu0 %963, %v942
  %v965 = vpop.permute.xlu0 %964
  %968 = vset.pattern.permute.xlu0 0
  %969 = vperm.xlu0 %968, %v943
  %v970 = vpop.permute.xlu0 %969
  %973 = vset.pattern.permute.xlu0 0
  %974 = vperm.xlu0 %973, %v944
  %v975 = vpop.permute.xlu0 %974
  %978 = vset.pattern.permute.xlu0 0
  %979 = vperm.xlu0 %978, %v945
  %v980 = vpop.permute.xlu0 %979
  %983 = vset.pattern.permute.xlu0 0
  %984 = vperm.xlu0 %983, %v946
  %v985 = vpop.permute.xlu0 %984
  %v987 = vadd.f32 %v931, %v950
  %v988 = vadd.f32 %v932, %v955
  %v989 = vadd.f32 %v933, %v960
  %v990 = vadd.f32 %v934, %v965
  %v991 = vadd.f32 %v935, %v970
  %v992 = vadd.f32 %v936, %v975
  %v993 = vadd.f32 %v937, %v980
  %v994 = vadd.f32 %v938, %v985
  %v995 = vmax.f32 %v987, 0.0
  %v996 = vmax.f32 %v988, 0.0
  %v997 = vmax.f32 %v989, 0.0
  %v998 = vmax.f32 %v990, 0.0
  %v999 = vmax.f32 %v991, 0.0
  %v1000 = vmax.f32 %v992, 0.0
  %v1001 = vmax.f32 %v993, 0.0
  %v1002 = vmax.f32 %v994, 0.0
  %v1003 = vld [vmem:[%s9] sm:$0xff]
  %v1004 = vld [vmem:[%s9 + $0x8] sm:$0xff]
  %v1005 = vld [vmem:[%s9 + $0x10] sm:$0xff]
  %v1006 = vld [vmem:[%s9 + $0x18] sm:$0xff]
  %v1007 = vld [vmem:[%s9 + $0x20] sm:$0xff]
  %v1008 = vld [vmem:[%s9 + $0x28] sm:$0xff]
  %v1009 = vld [vmem:[%s9 + $0x30] sm:$0xff]
  %v1010 = vld [vmem:[%s9 + $0x38] sm:$0xff]
  %1012 = vset.pattern.permute.xlu0 0
  %1013 = vperm.xlu0 %1012, %v1003
  %v1014 = vpop.permute.xlu0 %1013
  %1017 = vset.pattern.permute.xlu0 0
  %1018 = vperm.xlu0 %1017, %v1004
  %v1019 = vpop.permute.xlu0 %1018
  %1022 = vset.pattern.permute.xlu0 0
  %1023 = vperm.xlu0 %1022, %v1005
  %v1024 = vpop.permute.xlu0 %1023
  %1027 = vset.pattern.permute.xlu0 0
  %1028 = vperm.xlu0 %1027, %v1006
  %v1029 = vpop.permute.xlu0 %1028
  %1032 = vset.pattern.permute.xlu0 0
  %1033 = vperm.xlu0 %1032, %v1007
  %v1034 = vpop.permute.xlu0 %1033
  %1037 = vset.pattern.permute.xlu0 0
  %1038 = vperm.xlu0 %1037, %v1008
  %v1039 = vpop.permute.xlu0 %1038
  %1042 = vset.pattern.permute.xlu0 0
  %1043 = vperm.xlu0 %1042, %v1009
  %v1044 = vpop.permute.xlu0 %1043
  %1047 = vset.pattern.permute.xlu0 0
  %1048 = vperm.xlu0 %1047, %v1010
  %v1049 = vpop.permute.xlu0 %1048
  %v1051 = vmul.f32 %v995, %v1014
  %v1052 = vmul.f32 %v996, %v1019
  %v1053 = vmul.f32 %v997, %v1024
  %v1054 = vmul.f32 %v998, %v1029
  %v1055 = vmul.f32 %v999, %v1034
  %v1056 = vmul.f32 %v1000, %v1039
  %v1057 = vmul.f32 %v1001, %v1044
  %v1058 = vmul.f32 %v1002, %v1049
  %v1059 = vadd.f32 %v1051, %v1052
  %v1060 = vadd.f32 %v1059, %v1053
  %v1061 = vadd.f32 %v1060, %v1054
  %v1062 = vadd.f32 %v1061, %v1055
  %v1063 = vadd.f32 %v1062, %v1056
  %v1064 = vadd.f32 %v1063, %v1057
  %v1065 = vadd.f32 %v1064, %v1058
  %v1066 = vrot.slane %v1065, 4
  %v1067 = vadd.f32 %v1065, %v1066
  %v1068 = vrot.slane %v1067, 2
  %v1069 = vadd.f32 %v1067, %v1068
  %v1070 = vrot.slane %v1069, 1
  %v1071 = vadd.f32 %v1069, %v1070
  %s1072 = sld [smem:[#allocation2]]
  %v1073 = vstv %s1072
  %v1074 = vadd.f32 %v1071, %v1073
  %1075 = vst [vmem:[%s11] sm:$0x1] %v1074
  // Predicated region
  $region46: #{flow_predictor_forward.1} parent=0 // pred_check
    _
  $region47: #{flow_predictor_forward.1} parent=0 // pred_check_branch
    %1077 = sbr.rel (0) target = $region49
  $region48: #{flow_predictor_forward.1} parent=0 // pred_region
    _
  $region49: #{flow_predictor_forward.1} parent=0 // pred_fallthru
    _
  // Predicated region
  $region50: #{flow_predictor_forward.1} parent=0 // pred_check
    _
  $region51: #{flow_predictor_forward.1} parent=0 // pred_check_branch
    %1079 = sbr.rel (0) target = $region53
  $region52: #{flow_predictor_forward.1} parent=0 // pred_region
    _
  $region53: #{flow_predictor_forward.1} parent=0 // pred_fallthru
    _

</llo_original>
